<compile_context>
chip_gen: v6e
topology: v6e:2x2x1
jax: 0.10.0
libtpu: 0.0.40
codegen_flags: <defaults>
</compile_context>

<pallas_src>
import functools

import jax
import jax.numpy as jnp
from jax import lax
from jax.experimental import pallas as pl
from jax.experimental.pallas import tpu as pltpu

_EPS = 1e-5
_SLOPE = 0.2


def _compute_dtype(dt):
    # bf16 inputs: do the elementwise stage in bf16 (v6e/v7x VPU has bf16),
    # accumulate stats in f32. Everything else computes in f32.
    return jnp.bfloat16 if jnp.dtype(dt) == jnp.dtype(jnp.bfloat16) else jnp.float32


# ---------------------------------------------------------------------------
# Kernel 1: full-HW, channel-tiled (the common lane-dense case, HW >= 128)
# ---------------------------------------------------------------------------
def epilogue_full_kernel(x_ref, nz_ref, p_ref, o_ref):
    # x_ref:  (1, C_TILE, HW)    activation tile
    # nz_ref: (1, 1, HW)         per-sample noise map (broadcast over channels)
    # p_ref:  (1, 4, C_TILE, 1)  rows: [noise_weight, bias, style_scale+1, style_shift]
    hw = x_ref.shape[2]
    inv_hw = jnp.float32(1.0 / hw)
    cdt = _compute_dtype(x_ref.dtype)

    xv = x_ref[0].astype(cdt)                    # (C_TILE, HW)
    nzv = nz_ref[0].astype(cdt)                  # (1, HW)
    nw = p_ref[0, 0].astype(cdt)                 # (C_TILE, 1)
    b = p_ref[0, 1].astype(cdt)

    y = (xv + nw * nzv) + b                      # AddNoise, Bias
    y = jnp.maximum(y, _SLOPE * y)               # LeakyReLU(0.2)  (slope < 1)

    # Park the post-activation tile in the output buffer so the compiler does
    # not need a second full-tile temporary live across the reduction.
    o_ref[0] = y.astype(o_ref.dtype)

    yf = o_ref[0].astype(jnp.float32)
    s = jnp.sum(yf, axis=1, keepdims=True)       # (C_TILE, 1)
    ss = jnp.sum(yf * yf, axis=1, keepdims=True)
    mean = s * inv_hw
    var = jnp.maximum(ss * inv_hw - mean * mean, 0.0)   # clamp single-pass var
    inv_std = lax.rsqrt(var + _EPS)

    scale = inv_std * p_ref[0, 2].astype(jnp.float32)   # (scale+1) folded in wrapper
    shift = p_ref[0, 3].astype(jnp.float32) - mean * scale
    o_ref[0] = (o_ref[0].astype(jnp.float32) * scale + shift).astype(o_ref.dtype)


# ---------------------------------------------------------------------------
# Kernel 2: HW-tiled two-pass (high-resolution layers)
#   Grid axis 2 has length 2*n_hw ("arbitrary"): steps [0, n_hw) accumulate
#   per-channel sum / sum-of-squares into VMEM scratch; steps [n_hw, 2*n_hw)
#   re-read x and write the normalized + style-modulated output.
# ---------------------------------------------------------------------------
def epilogue_hw_tiled_kernel(n_hw, inv_total_hw, x_ref, nz_ref, p_ref, o_ref, st_ref):
    # st_ref: VMEM (4, C_TILE, 1) f32 scratch: [sum, sumsq, scale, shift]
    h = pl.program_id(2)
    cdt = _compute_dtype(x_ref.dtype)

    xv = x_ref[0].astype(cdt)
    nzv = nz_ref[0].astype(cdt)
    nw = p_ref[0, 0].astype(cdt)
    b = p_ref[0, 1].astype(cdt)
    y = (xv + nw * nzv) + b
    y = jnp.maximum(y, _SLOPE * y)
    yf = y.astype(jnp.float32)

    @pl.when(h == 0)
    def _():
        st_ref[0] = jnp.zeros_like(st_ref[0])
        st_ref[1] = jnp.zeros_like(st_ref[1])

    @pl.when(h < n_hw)                           # pass 1: accumulate stats
    def _():
        st_ref[0] += jnp.sum(yf, axis=1, keepdims=True)
        st_ref[1] += jnp.sum(yf * yf, axis=1, keepdims=True)

    @pl.when(h == n_hw - 1)                      # finalize scale/shift once
    def _():
        mean = st_ref[0] * jnp.float32(inv_total_hw)
        var = jnp.maximum(st_ref[1] * jnp.float32(inv_total_hw) - mean * mean, 0.0)
        inv_std = lax.rsqrt(var + _EPS)
        scale = inv_std * p_ref[0, 2].astype(jnp.float32)
        st_ref[2] = scale
        st_ref[3] = p_ref[0, 3].astype(jnp.float32) - mean * scale

    @pl.when(h >= n_hw)                          # pass 2: normalize + StyleMod
    def _():
        o_ref[0] = (yf * st_ref[2] + st_ref[3]).astype(o_ref.dtype)


# ---------------------------------------------------------------------------
# Kernel 3: channels-on-lanes (small spatial layers, HW < 128)
# ---------------------------------------------------------------------------
def epilogue_clanes_kernel(x_ref, nz_ref, p_ref, o_ref):
    # x_ref: (1, HW, C_TILE); nz_ref: (1, HW, 1); p_ref: (1, 4, 1, C_TILE)
    hw = x_ref.shape[1]
    inv_hw = jnp.float32(1.0 / hw)
    cdt = _compute_dtype(x_ref.dtype)

    xv = x_ref[0].astype(cdt)                    # (HW, C_TILE)
    nzv = nz_ref[0].astype(cdt)                  # (HW, 1)
    nw = p_ref[0, 0].astype(cdt)                 # (1, C_TILE)
    b = p_ref[0, 1].astype(cdt)

    y = (xv + nw * nzv) + b
    y = jnp.maximum(y, _SLOPE * y)
    o_ref[0] = y.astype(o_ref.dtype)

    yf = o_ref[0].astype(jnp.float32)
    s = jnp.sum(yf, axis=0, keepdims=True)       # (1, C_TILE) -- XLU reduce
    ss = jnp.sum(yf * yf, axis=0, keepdims=True)
    mean = s * inv_hw
    var = jnp.maximum(ss * inv_hw - mean * mean, 0.0)
    inv_std = lax.rsqrt(var + _EPS)
    scale = inv_std * p_ref[0, 2].astype(jnp.float32)
    shift = p_ref[0, 3].astype(jnp.float32) - mean * scale
    o_ref[0] = (o_ref[0].astype(jnp.float32) * scale + shift).astype(o_ref.dtype)


# ---------------------------------------------------------------------------
# Tiling / sizing helpers
# ---------------------------------------------------------------------------
def _generation_defaults():
    """Generation-aware sizing: large blocks and a high scoped-VMEM limit on
    128 MiB parts (v5e/v6e); tighter blocks, <=48 MiB limit and >=8 grid steps
    preferred on v7x-class parts (64 MiB VMEM per TensorCore, 2 TCs)."""
    try:
        vmem_phys = int(pltpu.get_tpu_info().vmem_capacity_bytes)
    except Exception:
        vmem_phys = 128 << 20
    if vmem_phys <= 96 << 20:                    # v7x-class
        return dict(block_target=6 << 20, vmem_cap=48 << 20, min_steps=8)
    return dict(block_target=14 << 20, vmem_cap=96 << 20, min_steps=4)


def _pick_tile(dim, unit, bytes_per_unit, target_bytes, n_outer, min_steps,
               fallback_smallest=False):
    """Largest tile t (multiple of `unit` dividing dim, or dim itself) with
    t*bytes_per_unit <= target_bytes, preferring tiles that still leave at
    least `min_steps` grid steps (n_outer * dim//t)."""
    cands = sorted({t for t in range(unit, dim + 1, unit) if dim % t == 0} | {dim})
    fitting = [t for t in cands if t * bytes_per_unit <= target_bytes]
    if not fitting:
        return min(cands) if fallback_smallest else None
    preferred = [t for t in fitting if n_outer * (dim // t) >= min_steps]
    return max(preferred) if preferred else max(fitting)


def _pick_hw_tile(HW, c_tile, itemsize, target_bytes, forced=None):
    if forced is not None:
        assert HW % forced == 0, "hw_tile must divide H*W"
        return forced
    cands = [t for t in range(128, HW, 128) if HW % t == 0]
    if not cands:
        # TODO(synk): HW with no multiple-of-128 divisor and too large for a
        # full-row block would need an Element/masked-tail tiling path.
        return HW
    fitting = [t for t in cands if c_tile * t * itemsize <= target_bytes]
    return max(fitting) if fitting else min(cands)


def _vmem_limit(buffer_bytes, cap):
    want = int(buffer_bytes * 1.25) + (4 << 20)
    return int(max(min(want, cap), min(32 << 20, cap)))


# ---------------------------------------------------------------------------
# pallas_call wrappers (one per path)
# ---------------------------------------------------------------------------
def _call_full(x, nz_flat, packed, N, C, HW, c_tile, itemsize, vmem_cap, out_dtype):
    assert C % c_tile == 0 and (c_tile % 8 == 0 or c_tile == C)
    blk = c_tile * HW * itemsize
    vmem_est = 4 * blk + 4 * HW * itemsize + 32 * c_tile + 2 * c_tile * HW * 4
    cost = pl.CostEstimate(
        flops=10 * N * C * HW, transcendentals=N * C,
        bytes_accessed=2 * N * C * HW * itemsize + N * HW * itemsize)
    return pl.pallas_call(
        epilogue_full_kernel,
        out_shape=jax.ShapeDtypeStruct((N, C, HW), out_dtype),
        grid_spec=pltpu.PrefetchScalarGridSpec(
            num_scalar_prefetch=0,
            grid=(N, C // c_tile),
            in_specs=[
                pl.BlockSpec((1, c_tile, HW), lambda n, c: (n, c, 0)),
                pl.BlockSpec((1, 1, HW), lambda n, c: (n, 0, 0)),
                pl.BlockSpec((1, 4, c_tile, 1), lambda n, c: (n, 0, c, 0)),
            ],
            out_specs=pl.BlockSpec((1, c_tile, HW), lambda n, c: (n, c, 0)),
        ),
        compiler_params=pltpu.CompilerParams(
            dimension_semantics=("parallel", "parallel"),
            vmem_limit_bytes=_vmem_limit(vmem_est, vmem_cap)),
        cost_estimate=cost,
    )(x, nz_flat, packed[..., None])


def _call_hw_tiled(x, nz_flat, packed, N, C, HW, c_tile, hw_tile, itemsize,
                   vmem_cap, out_dtype):
    assert HW % hw_tile == 0 and C % c_tile == 0
    n_hw = HW // hw_tile
    kernel = functools.partial(epilogue_hw_tiled_kernel, n_hw, 1.0 / float(HW))

    def in_hw(h):
        return jnp.where(h < n_hw, h, h - n_hw)

    blk = c_tile * hw_tile * itemsize
    vmem_est = 4 * blk + 4 * hw_tile * itemsize + 32 * c_tile + 2 * c_tile * hw_tile * 4
    cost = pl.CostEstimate(
        flops=14 * N * C * HW, transcendentals=N * C,
        bytes_accessed=3 * N * C * HW * itemsize + 2 * N * HW * itemsize)
    return pl.pallas_call(
        kernel,
        out_shape=jax.ShapeDtypeStruct((N, C, HW), out_dtype),
        grid_spec=pltpu.PrefetchScalarGridSpec(
            num_scalar_prefetch=0,
            grid=(N, C // c_tile, 2 * n_hw),
            in_specs=[
                pl.BlockSpec((1, c_tile, hw_tile), lambda n, c, h: (n, c, in_hw(h))),
                pl.BlockSpec((1, 1, hw_tile), lambda n, c, h: (n, 0, in_hw(h))),
                pl.BlockSpec((1, 4, c_tile, 1), lambda n, c, h: (n, 0, c, 0)),
            ],
            out_specs=pl.BlockSpec(
                (1, c_tile, hw_tile),
                lambda n, c, h: (n, c, jnp.maximum(h - n_hw, 0))),
            scratch_shapes=[pltpu.VMEM((4, c_tile, 1), jnp.float32)],
        ),
        compiler_params=pltpu.CompilerParams(
            dimension_semantics=("parallel", "parallel", "arbitrary"),
            vmem_limit_bytes=_vmem_limit(vmem_est, vmem_cap)),
        cost_estimate=cost,
    )(x, nz_flat, packed[..., None])


def _call_channels_on_lanes(x, nz_flat, packed, N, C, HW, itemsize,
                            block_target, vmem_cap, min_steps, out_dtype):
    # Transposed layout: channels on lanes, spatial on sublanes (HW < 128).
    x_t = x.transpose(0, 2, 1)                   # (N, HW, C)
    nz_t = nz_flat.transpose(0, 2, 1)            # (N, HW, 1)
    p_t = packed[:, :, None, :]                  # (N, 4, 1, C)

    c_lanes = _pick_tile(C, 128, HW * itemsize, block_target, N, min_steps,
                         fallback_smallest=True)
    assert C % c_lanes == 0
    blk = HW * c_lanes * itemsize
    vmem_est = 4 * blk + 4 * HW * itemsize + 32 * c_lanes + 2 * HW * c_lanes * 4
    cost = pl.CostEstimate(
        flops=10 * N * C * HW, transcendentals=N * C,
        bytes_accessed=2 * N * C * HW * itemsize + N * HW * itemsize)
    return pl.pallas_call(
        epilogue_clanes_kernel,
        out_shape=jax.ShapeDtypeStruct((N, HW, C), out_dtype),
        grid_spec=pltpu.PrefetchScalarGridSpec(
            num_scalar_prefetch=0,
            grid=(N, C // c_lanes),
            in_specs=[
                pl.BlockSpec((1, HW, c_lanes), lambda n, c: (n, 0, c)),
                pl.BlockSpec((1, HW, 1), lambda n, c: (n, 0, 0)),
                pl.BlockSpec((1, 4, 1, c_lanes), lambda n, c: (n, 0, 0, c)),
            ],
            out_specs=pl.BlockSpec((1, HW, c_lanes), lambda n, c: (n, 0, c)),
        ),
        compiler_params=pltpu.CompilerParams(
            dimension_semantics=("parallel", "parallel"),
            vmem_limit_bytes=_vmem_limit(vmem_est, vmem_cap)),
        cost_estimate=cost,
    )(x_t, nz_t, p_t)


# ---------------------------------------------------------------------------
# Public entry point
# ---------------------------------------------------------------------------
def layer_epilogue(x_nchw, w, nz, params, *, c_tile=None, hw_tile=None,
                   block_target_bytes=None, vmem_cap_bytes=None,
                   min_grid_steps=None):
    """Fused AddNoise + Bias + LeakyReLU(0.2) + InstanceNorm2d + StyleMod.

    x_nchw: [N, C, H, W]; w: [N, L]; nz: [N, 1, H, W].
    """
    N, C, H, W = x_nchw.shape
    HW = H * W
    itemsize = jnp.dtype(x_nchw.dtype).itemsize
    out_dtype = x_nchw.dtype

    gen = _generation_defaults()
    block_target = block_target_bytes or gen["block_target"]
    vmem_cap = vmem_cap_bytes or gen["vmem_cap"]
    min_steps = min_grid_steps or gen["min_steps"]

    # StyleMod affine: far below one MXU pass -> plain XLA in the wrapper.
    style = (jnp.dot(w.astype(jnp.float32), params["w_style_t"].astype(jnp.float32))
             + params["b_style"].astype(jnp.float32))                 # (N, 2C)
    ys = style[:, :C] + 1.0
    yb = style[:, C:]
    nw = jnp.broadcast_to(params["noise_weight"].astype(jnp.float32)[None, :], (N, C))
    bb = jnp.broadcast_to(params["bias"].astype(jnp.float32)[None, :], (N, C))
    packed = jnp.stack([nw, bb, ys, yb], axis=1)                      # (N, 4, C)

    x = x_nchw.reshape(N, C, HW)
    nz_flat = nz.reshape(N, 1, HW)

    # Path 1: small spatial -> channels on lanes (keeps stores lane-dense).
    if HW < 128:
        out = _call_channels_on_lanes(x, nz_flat, packed, N, C, HW, itemsize,
                                      block_target, vmem_cap, min_steps, out_dtype)
        return out.transpose(0, 2, 1).reshape(N, C, H, W)

    c_min = c_tile if c_tile is not None else (8 if C % 8 == 0 else C)

    # Path 2: HW-tiled two-pass for huge spatial (or when forced via hw_tile).
    if hw_tile is not None or c_min * HW * itemsize > block_target:
        hwt = _pick_hw_tile(HW, c_min, itemsize, block_target, forced=hw_tile)
        if hwt < HW:
            out = _call_hw_tiled(x, nz_flat, packed, N, C, HW, c_min, hwt,
                                 itemsize, vmem_cap, out_dtype)
            return out.reshape(N, C, H, W)

    # Path 3: full-HW, channel-tiled (common case).
    ct = c_tile if c_tile is not None else _pick_tile(
        C, 8, HW * itemsize, block_target, N, min_steps, fallback_smallest=True)
    out = _call_full(x, nz_flat, packed, N, C, HW, ct, itemsize, vmem_cap, out_dtype)
    return out.reshape(N, C, H, W)


# ---------------------------------------------------------------------------
# Pure-JAX reference
# ---------------------------------------------------------------------------
def layer_epilogue_ref(x, w, nz, params):
    N, C, H, W = x.shape
    x = x + params["noise_weight"].reshape(1, C, 1, 1) * nz
    x = x + params["bias"].reshape(1, C, 1, 1)
    x = jnp.where(x >= 0.0, x, 0.2 * x)
    mean = jnp.mean(x, axis=(2, 3), keepdims=True)
    var = jnp.mean((x - mean) ** 2, axis=(2, 3), keepdims=True)
    x = (x - mean) / jnp.sqrt(var + 1e-5)
    style = w @ params["w_style_t"] + params["b_style"]
    ys = (style[:, :C] + 1.0).reshape(N, C, 1, 1)
    yb = style[:, C:].reshape(N, C, 1, 1)
    return x * ys + yb


if __name__ == "__main__":
    # TODO(synk): the module's debug print('after ...', x.max()) lines are host-side
    # logging and are intentionally not reproduced.
    def make_inputs(key, N, C, H, W, L):
        ks = jax.random.split(key, 7)
        x = jax.random.normal(ks[0], (N, C, H, W), dtype=jnp.float32)
        w = jax.random.normal(ks[1], (N, L), dtype=jnp.float32)
        nz = jax.random.normal(ks[2], (N, 1, H, W), dtype=jnp.float32)
        params = {
            "noise_weight": jax.random.normal(ks[3], (C,), dtype=jnp.float32) * 0.1,
            "bias": jax.random.normal(ks[4], (C,), dtype=jnp.float32) * 0.1,
            "w_style_t": jax.random.normal(ks[5], (L, 2 * C), dtype=jnp.float32) * 0.1,
            "b_style": jax.random.normal(ks[6], (1, 2 * C), dtype=jnp.float32) * 0.1,
        }
        return x, w, nz, params

    k1, k2, _ = jax.random.split(jax.random.PRNGKey(0), 3)

    # 1) Main lane-dense path (HW >= 128): N=2, C=8, 16x16, latent 16.
    x, w, nz, params = make_inputs(k1, 2, 8, 16, 16, 16)
    out = jax.block_until_ready(layer_epilogue(x, w, nz, params))
    ref = layer_epilogue_ref(x, w, nz, params)
    assert out.shape == x.shape
    assert jnp.allclose(out, ref, atol=1e-4, rtol=1e-4), "full-HW path mismatch"

    # 2) HW-tiled two-pass path (forced small hw_tile to exercise it).
    out2 = jax.block_until_ready(layer_epilogue(x, w, nz, params, hw_tile=128))
    assert jnp.allclose(out2, ref, atol=1e-4, rtol=1e-4), "HW-tiled path mismatch"

    # 3) Small-spatial path (channels on lanes): N=2, C=256, 4x4.
    x3, w3, nz3, params3 = make_inputs(k2, 2, 256, 4, 4, 16)
    out3 = jax.block_until_ready(layer_epilogue(x3, w3, nz3, params3))
    ref3 = layer_epilogue_ref(x3, w3, nz3, params3)
    assert jnp.allclose(out3, ref3, atol=1e-4, rtol=1e-4), "small-HW path mismatch"

    print("KERNEL_OK")
</pallas_src>

<mosaic_0001>
module attributes {stable_mosaic.version = 11 : i64} {
  func.func @epilogue_full_kernel(%arg0: i32, %arg1: i32, %arg2: memref<1x8x256xf32, #tpu.memory_space<vmem>>, %arg3: memref<1x1x256xf32, #tpu.memory_space<vmem>>, %arg4: memref<1x4x8x1xf32, #tpu.memory_space<vmem>>, %arg5: memref<1x8x256xf32, #tpu.memory_space<vmem>>) attributes {dimension_semantics = [#tpu.dimension_semantics<parallel>, #tpu.dimension_semantics<parallel>], iteration_bounds = array<i64: 2, 1>, scalar_prefetch = 0 : i64, scratch_operands = 0 : i64, tpu.core_type = #tpu.core_type<tc>, window_params = [{transform_indices = @transform_0, window_bounds = array<i64: 1, 8, 256>}, {transform_indices = @transform_1, window_bounds = array<i64: 1, 1, 256>}, {transform_indices = @transform_2, window_bounds = array<i64: 1, 4, 8, 1>}, {transform_indices = @transform_3, window_bounds = array<i64: 1, 8, 256>}]} {
    %c0 = arith.constant 0 : index
    %c0_0 = arith.constant 0 : index
    %c0_1 = arith.constant 0 : index
    %0 = vector.load %arg2[%c0, %c0_0, %c0_1] : memref<1x8x256xf32, #tpu.memory_space<vmem>>, vector<1x8x256xf32>
    %1 = vector.shape_cast %0 : vector<1x8x256xf32> to vector<8x256xf32>
    %c0_2 = arith.constant 0 : index
    %c0_3 = arith.constant 0 : index
    %c0_4 = arith.constant 0 : index
    %2 = vector.load %arg3[%c0_2, %c0_3, %c0_4] : memref<1x1x256xf32, #tpu.memory_space<vmem>>, vector<1x1x256xf32>
    %3 = vector.shape_cast %2 : vector<1x1x256xf32> to vector<1x256xf32>
    %c0_5 = arith.constant 0 : index
    %c0_6 = arith.constant 0 : index
    %c0_7 = arith.constant 0 : index
    %c0_8 = arith.constant 0 : index
    %4 = vector.load %arg4[%c0_5, %c0_6, %c0_7, %c0_8] : memref<1x4x8x1xf32, #tpu.memory_space<vmem>>, vector<1x1x8x1xf32>
    %5 = vector.shape_cast %4 : vector<1x1x8x1xf32> to vector<8x1xf32>
    %c0_9 = arith.constant 0 : index
    %c1 = arith.constant 1 : index
    %c0_10 = arith.constant 0 : index
    %c0_11 = arith.constant 0 : index
    %6 = vector.load %arg4[%c0_9, %c1, %c0_10, %c0_11] : memref<1x4x8x1xf32, #tpu.memory_space<vmem>>, vector<1x1x8x1xf32>
    %7 = vector.shape_cast %6 : vector<1x1x8x1xf32> to vector<8x1xf32>
    %8 = vector.broadcast %5 : vector<8x1xf32> to vector<8x256xf32>
    %9 = vector.broadcast %3 : vector<1x256xf32> to vector<8x256xf32>
    %10 = arith.mulf %8, %9 : vector<8x256xf32>
    %11 = arith.addf %1, %10 : vector<8x256xf32>
    %12 = vector.broadcast %7 : vector<8x1xf32> to vector<8x256xf32>
    %13 = arith.addf %11, %12 : vector<8x256xf32>
    %cst = arith.constant 2.000000e-01 : f32
    %14 = vector.broadcast %cst : f32 to vector<8x256xf32>
    %15 = arith.mulf %14, %13 : vector<8x256xf32>
    %16 = arith.maximumf %13, %15 : vector<8x256xf32>
    %c0_12 = arith.constant 0 : index
    %c0_13 = arith.constant 0 : index
    %c0_14 = arith.constant 0 : index
    %17 = vector.load %arg5[%c0_12, %c0_13, %c0_14] : memref<1x8x256xf32, #tpu.memory_space<vmem>>, vector<1x8x256xf32>
    %18 = vector.shape_cast %17 : vector<1x8x256xf32> to vector<8x256xf32>
    %19 = vector.shape_cast %16 : vector<8x256xf32> to vector<1x8x256xf32>
    tpu.vector_store %arg5[%c0_12, %c0_13, %c0_14], %19 {strides = array<i32>} : memref<1x8x256xf32, #tpu.memory_space<vmem>>, vector<1x8x256xf32>,
    %c0_15 = arith.constant 0 : index
    %c0_16 = arith.constant 0 : index
    %c0_17 = arith.constant 0 : index
    %20 = vector.load %arg5[%c0_15, %c0_16, %c0_17] : memref<1x8x256xf32, #tpu.memory_space<vmem>>, vector<1x8x256xf32>
    %21 = vector.shape_cast %20 : vector<1x8x256xf32> to vector<8x256xf32>
    %cst_18 = arith.constant dense<0.000000e+00> : vector<8xf32>
    %22 = vector.multi_reduction <add>, %21, %cst_18 [1] : vector<8x256xf32> to vector<8xf32>
    %23 = vector.shape_cast %22 : vector<8xf32> to vector<8x1xf32>
    %24 = arith.mulf %21, %21 : vector<8x256xf32>
    %cst_19 = arith.constant dense<0.000000e+00> : vector<8xf32>
    %25 = vector.multi_reduction <add>, %24, %cst_19 [1] : vector<8x256xf32> to vector<8xf32>
    %26 = vector.shape_cast %25 : vector<8xf32> to vector<8x1xf32>
    %cst_20 = arith.constant 3.906250e-03 : f32
    %27 = vector.broadcast %cst_20 : f32 to vector<8x1xf32>
    %28 = arith.mulf %23, %27 : vector<8x1xf32>
    %cst_21 = arith.constant 3.906250e-03 : f32
    %29 = vector.broadcast %cst_21 : f32 to vector<8x1xf32>
    %30 = arith.mulf %26, %29 : vector<8x1xf32>
    %31 = arith.mulf %28, %28 : vector<8x1xf32>
    %32 = arith.subf %30, %31 : vector<8x1xf32>
    %cst_22 = arith.constant 0.000000e+00 : f32
    %33 = vector.broadcast %cst_22 : f32 to vector<8x1xf32>
    %34 = arith.maximumf %32, %33 : vector<8x1xf32>
    %cst_23 = arith.constant 9.99999974E-6 : f32
    %35 = vector.broadcast %cst_23 : f32 to vector<8x1xf32>
    %36 = arith.addf %34, %35 : vector<8x1xf32>
    %37 = math.rsqrt %36 : vector<8x1xf32>
    %c0_24 = arith.constant 0 : index
    %c2 = arith.constant 2 : index
    %c0_25 = arith.constant 0 : index
    %c0_26 = arith.constant 0 : index
    %38 = vector.load %arg4[%c0_24, %c2, %c0_25, %c0_26] : memref<1x4x8x1xf32, #tpu.memory_space<vmem>>, vector<1x1x8x1xf32>
    %39 = vector.shape_cast %38 : vector<1x1x8x1xf32> to vector<8x1xf32>
    %40 = arith.mulf %37, %39 : vector<8x1xf32>
    %c0_27 = arith.constant 0 : index
    %c3 = arith.constant 3 : index
    %c0_28 = arith.constant 0 : index
    %c0_29 = arith.constant 0 : index
    %41 = vector.load %arg4[%c0_27, %c3, %c0_28, %c0_29] : memref<1x4x8x1xf32, #tpu.memory_space<vmem>>, vector<1x1x8x1xf32>
    %42 = vector.shape_cast %41 : vector<1x1x8x1xf32> to vector<8x1xf32>
    %43 = arith.mulf %28, %40 : vector<8x1xf32>
    %44 = arith.subf %42, %43 : vector<8x1xf32>
    %c0_30 = arith.constant 0 : index
    %c0_31 = arith.constant 0 : index
    %c0_32 = arith.constant 0 : index
    %45 = vector.load %arg5[%c0_30, %c0_31, %c0_32] : memref<1x8x256xf32, #tpu.memory_space<vmem>>, vector<1x8x256xf32>
    %46 = vector.shape_cast %45 : vector<1x8x256xf32> to vector<8x256xf32>
    %47 = vector.broadcast %40 : vector<8x1xf32> to vector<8x256xf32>
    %48 = arith.mulf %46, %47 : vector<8x256xf32>
    %49 = vector.broadcast %44 : vector<8x1xf32> to vector<8x256xf32>
    %50 = arith.addf %48, %49 : vector<8x256xf32>
    %c0_33 = arith.constant 0 : index
    %c0_34 = arith.constant 0 : index
    %c0_35 = arith.constant 0 : index
    %51 = vector.load %arg5[%c0_33, %c0_34, %c0_35] : memref<1x8x256xf32, #tpu.memory_space<vmem>>, vector<1x8x256xf32>
    %52 = vector.shape_cast %51 : vector<1x8x256xf32> to vector<8x256xf32>
    %53 = vector.shape_cast %50 : vector<8x256xf32> to vector<1x8x256xf32>
    tpu.vector_store %arg5[%c0_33, %c0_34, %c0_35], %53 {strides = array<i32>} : memref<1x8x256xf32, #tpu.memory_space<vmem>>, vector<1x8x256xf32>,
    return
  }
  func.func @transform_0(%arg0: i32, %arg1: i32) -> (i32, i32, i32) {
    %c0_i32 = arith.constant 0 : i32
    %c0_i32_0 = arith.constant 0 : i32
    return %arg0, %arg1, %c0_i32 : i32, i32, i32
  }
  func.func @transform_1(%arg0: i32, %arg1: i32) -> (i32, i32, i32) {
    %c0_i32 = arith.constant 0 : i32
    %c0_i32_0 = arith.constant 0 : i32
    %c0_i32_1 = arith.constant 0 : i32
    return %arg0, %c0_i32, %c0_i32_0 : i32, i32, i32
  }
  func.func @transform_2(%arg0: i32, %arg1: i32) -> (i32, i32, i32, i32) {
    %c0_i32 = arith.constant 0 : i32
    %c0_i32_0 = arith.constant 0 : i32
    %c0_i32_1 = arith.constant 0 : i32
    return %arg0, %c0_i32, %arg1, %c0_i32_0 : i32, i32, i32, i32
  }
  func.func @transform_3(%arg0: i32, %arg1: i32) -> (i32, i32, i32) {
    %c0_i32 = arith.constant 0 : i32
    %c0_i32_0 = arith.constant 0 : i32
    return %arg0, %arg1, %c0_i32 : i32, i32, i32
  }
}

</mosaic_0001>

<llo_original>
// kernel: tpu_custom_call.1
$region0: #{tpu_custom_call.1}
  #allocation0 [shape = 'u32[]', space=smem, size = 0x4, offset = 0x4, fixed_abs, tag = 'smem constant byte address 0x4 - core index']
  #allocation1 [shape = 'u32[144,128]{1,0:T(1,128)}', space=vmem, size = 0x12000, scoped, tag = 'internal scratch']
  %s0 = inlined_call_operand.vmem [shape: f32[2,8,256], index: 0, kind: input, shape index: {}]
  %s1 = inlined_call_operand.vmem [shape: f32[2,1,256], index: 1, kind: input, shape index: {}]
  %s2 = inlined_call_operand.vmem [shape: f32[2,4,8,1], index: 2, kind: input, shape index: {}]
  %s3 = inlined_call_operand.hbm [shape: f32[2,8,256], index: 3, kind: output, shape index: {}]
  %s4 = sld [smem:[#allocation0]]
  $region45: #{tpu_custom_call.1} parent=0
    _
  %s6 = ssub.s32 1, %s4
  %s7 = scalar_select 0, %s6, %s4
  $region1: #{tpu_custom_call.1} parent=0
    #allocation2 [shape = 'u8[16384]{0}', space=vmem, size = 0x4000, scoped, tag = 'output window, operand 0']
    #allocation3 [shape = 's32[2]{0}', space=sflag, size = 0x8, scoped, tag = 'scoped memory for tpu_custom_call.1']
    %8 = vsyncpa [#allocation3], 0
    %s9 = scalar_lea.sflag [#allocation3], 1
    %10 = vsyncpa %s9, 0
    loop: start=0, step=1, limit=4
    $region2: #{tpu_custom_call.1} parent=1 // loop_pre_header
      _
    $region3: #{tpu_custom_call.1} parent=1 // loop_header
      %s12 = sphi 0, %s16
      %p13 = scmp.ge.s32.totalorder %s12, 4
      %s19 = sphi 0, %s31
      %s20 = sphi 0, %s27
      %s21 = sphi 0, %s19
      %s22 = sphi 0, %s20
      %s23 = sphi 0, %s21
      %s24 = sphi 0, %s22
      %s36 = sphi 0, %s38
      %s39 = sphi 0, %s36
      %s40 = sphi 0, %s39
      %s56 = sphi 0, %s40
      %s62 = sphi 0, %s64
      %s65 = sphi 0, %s62
      %s66 = sphi 0, %s65
      %s82 = sphi 0, %s66
      %s90 = sphi 0, %s92
      %s93 = sphi 0, %s90
      %s94 = sphi 0, %s93
      %s110 = sphi 0, %s94
      %s118 = sphi 0, %s120
      %s121 = sphi 0, %s118
      %s122 = sphi 0, %s121
      %s138 = sphi 0, %s122
    $region4: #{tpu_custom_call.1} parent=1 // loop_header_branch
      %15 = sbr.rel (%p13) target = $region8
    $region5: #{tpu_custom_call.1} parent=1 // loop_body
      %s17 = ssub.s32 %s12, 1
      %s18 = ssub.s32 %s12, 2
      %s25 = sadd.s32 1, %s20
      %p26 = scmp.ge.s32.totalorder %s25, 1
      %s27 = scalar_select %p26, 0, %s25
      %s28 = sadd.s32 1, %s19
      %s29 = scalar_select %p26, %s28, %s19
      %p30 = scmp.ge.s32.totalorder %s29, 2
      %s31 = scalar_select %p30, 0, %s29
      %s32 = ssub.s32 %s19, %s31
      %s33 = ssub.s32 %s20, %s27
      %s34 = sor.u32 %s32, %s33
      %p35 = scmp.eq.s32.totalorder %s34, 0
      %s37 = sadd.s32 %s36, 1
      %s38 = scalar_select %p35, %s36, %s37
      %p41 = pneg %p35
      %p42 = scmp.eq.s32.totalorder %s12, 1
      %p43 = por %p41, %p42
      %p44 = scmp.ne.s32.totalorder %s36, %s39
      %p45 = scmp.eq.s32.totalorder %s12, 0
      %p46 = por %p44, %p45
      %p47 = scmp.ne.s32.totalorder %s36, %s39
      %p48 = scmp.eq.s32.totalorder %s17, 1
      %p49 = por %p47, %p48
      %p50 = scmp.ne.s32.totalorder %s39, %s40
      %p51 = scmp.eq.s32.totalorder %s17, 0
      %p52 = por %p50, %p51
      %p53 = scmp.ne.s32.totalorder %s39, %s40
      %p54 = scmp.eq.s32.totalorder %s18, 1
      %p55 = por %p53, %p54
      %p57 = scmp.ne.s32.totalorder %s40, %s56
      %p58 = scmp.eq.s32.totalorder %s18, 0
      %p59 = por %p57, %p58
      %s60 = ssub.s32 %s19, %s31
      %p61 = scmp.eq.s32.totalorder %s60, 0
      %s63 = sadd.s32 %s62, 1
      %s64 = scalar_select %p61, %s62, %s63
      %p67 = pneg %p61
      %p68 = scmp.eq.s32.totalorder %s12, 1
      %p69 = por %p67, %p68
      %p70 = scmp.ne.s32.totalorder %s62, %s65
      %p71 = scmp.eq.s32.totalorder %s12, 0
      %p72 = por %p70, %p71
      %p73 = scmp.ne.s32.totalorder %s62, %s65
      %p74 = scmp.eq.s32.totalorder %s17, 1
      %p75 = por %p73, %p74
      %p76 = scmp.ne.s32.totalorder %s65, %s66
      %p77 = scmp.eq.s32.totalorder %s17, 0
      %p78 = por %p76, %p77
      %p79 = scmp.ne.s32.totalorder %s65, %s66
      %p80 = scmp.eq.s32.totalorder %s18, 1
      %p81 = por %p79, %p80
      %p83 = scmp.ne.s32.totalorder %s66, %s82
      %p84 = scmp.eq.s32.totalorder %s18, 0
      %p85 = por %p83, %p84
      %s86 = ssub.s32 %s19, %s31
      %s87 = ssub.s32 %s20, %s27
      %s88 = sor.u32 %s86, %s87
      %p89 = scmp.eq.s32.totalorder %s88, 0
      %s91 = sadd.s32 %s90, 1
      %s92 = scalar_select %p89, %s90, %s91
      %p95 = pneg %p89
      %p96 = scmp.eq.s32.totalorder %s12, 1
      %p97 = por %p95, %p96
      %p98 = scmp.ne.s32.totalorder %s90, %s93
      %p99 = scmp.eq.s32.totalorder %s12, 0
      %p100 = por %p98, %p99
      %p101 = scmp.ne.s32.totalorder %s90, %s93
      %p102 = scmp.eq.s32.totalorder %s17, 1
      %p103 = por %p101, %p102
      %p104 = scmp.ne.s32.totalorder %s93, %s94
      %p105 = scmp.eq.s32.totalorder %s17, 0
      %p106 = por %p104, %p105
      %p107 = scmp.ne.s32.totalorder %s93, %s94
      %p108 = scmp.eq.s32.totalorder %s18, 1
      %p109 = por %p107, %p108
      %p111 = scmp.ne.s32.totalorder %s94, %s110
      %p112 = scmp.eq.s32.totalorder %s18, 0
      %p113 = por %p111, %p112
      %s114 = ssub.s32 %s19, %s31
      %s115 = ssub.s32 %s20, %s27
      %s116 = sor.u32 %s114, %s115
      %p117 = scmp.eq.s32.totalorder %s116, 0
      %s119 = sadd.s32 %s118, 1
      %s120 = scalar_select %p117, %s118, %s119
      %p123 = pneg %p117
      %p124 = scmp.eq.s32.totalorder %s12, 1
      %p125 = por %p123, %p124
      %p126 = scmp.ne.s32.totalorder %s118, %s121
      %p127 = scmp.eq.s32.totalorder %s12, 0
      %p128 = por %p126, %p127
      %p129 = scmp.ne.s32.totalorder %s118, %s121
      %p130 = scmp.eq.s32.totalorder %s17, 1
      %p131 = por %p129, %p130
      %p132 = scmp.ne.s32.totalorder %s121, %s122
      %p133 = scmp.eq.s32.totalorder %s17, 0
      %p134 = por %p132, %p133
      %p135 = scmp.ne.s32.totalorder %s121, %s122
      %p136 = scmp.eq.s32.totalorder %s18, 1
      %p137 = por %p135, %p136
      %p139 = scmp.ne.s32.totalorder %s122, %s138
      %p140 = scmp.eq.s32.totalorder %s18, 0
      %p141 = por %p139, %p140
      %p142 = scmp.le.s32.totalorder 1, %s12
      %p143 = scmp.lt.s32.totalorder %s12, 3
      %p144 = pnand %p142, %p143
      %p145 = pneg %p144
      // Predicated region
      $region9: #{tpu_custom_call.1} parent=5 // pred_check
        _
      $region10: #{tpu_custom_call.1} parent=5 // pred_check_branch
        %147 = sbr.rel (%p144) target = $region12
      $region11: #{tpu_custom_call.1} parent=5 // pred_region
        %s148 = ssub.s32 %s12, 1
      $region12: #{tpu_custom_call.1} parent=5 // pred_fallthru
        _
      %p149 = scmp.lt.s32.totalorder %s12, 2
      // Predicated region
      $region13: #{tpu_custom_call.1} parent=5 // pred_check
        %p150 = pneg %p149
      $region14: #{tpu_custom_call.1} parent=5 // pred_check_branch
        %152 = sbr.rel (%p150) target = $region16
      $region15: #{tpu_custom_call.1} parent=5 // pred_region
        // Predicated region
        $region17: #{tpu_custom_call.1} parent=15 // pred_check
          %p153 = pneg %p46
        $region18: #{tpu_custom_call.1} parent=15 // pred_check_branch
          %155 = sbr.rel (%p153) target = $region20
        $region19: #{tpu_custom_call.1} parent=15 // pred_region
          %p156 = scmp.lt.s32.totalorder %s19, 1
          %s157 = scalar_select %p156, %s19, 1
          %p158 = scmp.lt.s32.totalorder %s20, 0
          %s159 = scalar_select %p158, %s20, 0
          %s160 = smul.addr %s159, 2
          %s161 = smul.addr %s157, 2
          %s162 = sadd.s32 %s160, %s161
          %s163 = smul.addr %s162, 8
          %s164 = scalar_lea.vmem %s0, %s163
        $region20: #{tpu_custom_call.1} parent=15 // pred_fallthru
          _
        // Predicated region
        $region21: #{tpu_custom_call.1} parent=15 // pred_check
          %p165 = pneg %p72
        $region22: #{tpu_custom_call.1} parent=15 // pred_check_branch
          %167 = sbr.rel (%p165) target = $region24
        $region23: #{tpu_custom_call.1} parent=15 // pred_region
          %p168 = scmp.lt.s32.totalorder %s19, 1
          %s169 = scalar_select %p168, %s19, 1
          %s170 = smul.addr %s169, 2
          %s171 = scalar_lea.vmem %s1, %s170
        $region24: #{tpu_custom_call.1} parent=15 // pred_fallthru
          _
        // Predicated region
        $region25: #{tpu_custom_call.1} parent=15 // pred_check
          %p172 = pneg %p100
        $region26: #{tpu_custom_call.1} parent=15 // pred_check_branch
          %174 = sbr.rel (%p172) target = $region28
        $region27: #{tpu_custom_call.1} parent=15 // pred_region
          %p175 = scmp.lt.s32.totalorder %s19, 1
          %s176 = scalar_select %p175, %s19, 1
          %p177 = scmp.lt.s32.totalorder %s20, 0
          %s178 = scalar_select %p177, %s20, 0
          %s179 = smul.addr %s176, 4
          %s180 = sadd.s32 %s178, %s179
          %s181 = smul.addr %s180, 8
          %s182 = scalar_lea.vmem %s2, %s181
        $region28: #{tpu_custom_call.1} parent=15 // pred_fallthru
          _
      $region16: #{tpu_custom_call.1} parent=5 // pred_fallthru
        _
      %p183 = scmp.le.s32.totalorder 1, %s12
      %p184 = scmp.lt.s32.totalorder %s12, 3
      %p185 = pnand %p183, %p184
      %p186 = pneg %p185
      // Predicated region
      $region29: #{tpu_custom_call.1} parent=5 // pred_check
        _
      $region30: #{tpu_custom_call.1} parent=5 // pred_check_branch
        %188 = sbr.rel (%p185) target = $region32
      $region31: #{tpu_custom_call.1} parent=5 // pred_region
        %s189 = ssub.s32 %s12, 1
        %p190 = scmp.lt.s32.totalorder %s21, 1
        %s191 = scalar_select %p190, %s21, 1
        %p192 = scmp.lt.s32.totalorder %s22, 0
        %s193 = scalar_select %p192, %s22, 0
        %s194 = smul.addr %s193, 2
        %s195 = smul.addr %s191, 2
        %s196 = sadd.s32 %s194, %s195
        %s197 = smul.addr %s196, 8
        %s198 = scalar_lea.vmem %s0, %s197
        %p199 = pneg %p52
        %p200 = pneg %p49
        %p201 = scmp.lt.s32.totalorder %s21, 1
        %s202 = scalar_select %p201, %s21, 1
        %s203 = smul.addr %s202, 2
        %s204 = scalar_lea.vmem %s1, %s203
        %p205 = pneg %p78
        %p206 = pneg %p75
        %p207 = scmp.lt.s32.totalorder %s21, 1
        %s208 = scalar_select %p207, %s21, 1
        %p209 = scmp.lt.s32.totalorder %s22, 0
        %s210 = scalar_select %p209, %s22, 0
        %s211 = smul.addr %s208, 4
        %s212 = sadd.s32 %s210, %s211
        %s213 = smul.addr %s212, 8
        %s214 = scalar_lea.vmem %s2, %s213
        %p215 = pneg %p106
        %p216 = pneg %p103
        %p217 = pneg %p134
        %p218 = pneg %p131
        %s219 = sand.u32 %s121, 1
        %s220 = scalar_lea.sflag [#allocation3], %s219
        %s221 = sand.u32 %s121, 1
        %s222 = smul.addr %s221, 16
        %s223 = scalar_lea.vmem [#allocation2], %s222
        %p224 = scmp.lt.s32.totalorder %s21, 1
        %s225 = scalar_select %p224, %s21, 1
        %p226 = scmp.lt.s32.totalorder %s22, 0
        %s227 = scalar_select %p226, %s22, 0
        %s228 = smul.addr %s227, 2
        %s229 = smul.addr %s225, 2
        %s230 = sadd.s32 %s228, %s229
        %s231 = smul.addr %s230, 8
        %s232 = scalar_lea.vmem %s0, %s231
        %p233 = scmp.lt.s32.totalorder %s21, 1
        %s234 = scalar_select %p233, %s21, 1
        %s235 = smul.addr %s234, 2
        %s236 = scalar_lea.vmem %s1, %s235
        %p237 = scmp.lt.s32.totalorder %s21, 1
        %s238 = scalar_select %p237, %s21, 1
        %p239 = scmp.lt.s32.totalorder %s22, 0
        %s240 = scalar_select %p239, %s22, 0
        %s241 = smul.addr %s238, 4
        %s242 = sadd.s32 %s240, %s241
        %s243 = smul.addr %s242, 8
        %s244 = scalar_lea.vmem %s2, %s243
        %v245 = vld [vmem:[%s232] sm:$0xff]
        %v246 = vld [vmem:[%s232 + $0x8] sm:$0xff]
        %v247 = vld [vmem:[%s236] sm:$0x3]
        %v248 = vld [vmem:[%s244] sm:$0xff]
        %s249 = scalar_lea.vmem %s244, 8
        %v250 = vld [vmem:[%s249] sm:$0xff]
        %252 = vset.pattern.permute.xlu0 0
        %253 = vperm.xlu0 %252, %v248
        %v254 = vpop.permute.xlu0 %253
        %v257 = vlaneseq
        %v258 = vshrl.u32 %v257, 7
        %v259 = vsub.s32 0, %v258
        %v260 = vrot.slane %v247, %v259
        %v261 = vlaneseq
        %v262 = vshrl.u32 %v261, 7
        %v263 = vsub.s32 1, %v262
        %v264 = vrot.slane %v247, %v263
        %v267 = vmul.f32 %v254, %v260
        %v268 = vmul.f32 %v254, %v264
        %v269 = vadd.f32 %v245, %v267
        %v270 = vadd.f32 %v246, %v268
        %272 = vset.pattern.permute.xlu0 0
        %273 = vperm.xlu0 %272, %v250
        %v274 = vpop.permute.xlu0 %273
        %v276 = vadd.f32 %v269, %v274
        %v277 = vadd.f32 %v270, %v274
        %v278 = vmul.f32 %v276, 0.2
        %v279 = vmul.f32 %v277, 0.2
        %v280 = vmax.f32 %v276, %v278
        %v281 = vmax.f32 %v277, %v279
        %282 = vst [vmem:[%s223] sm:$0xff] %v280
        %283 = vst [vmem:[%s223 + $0x8] sm:$0xff] %v281
        %v284 = vld [vmem:[%s223] sm:$0xff]
        %v285 = vld [vmem:[%s223 + $0x8] sm:$0xff]
        %v286 = vadd.f32 %v284, %v285
        %287 = vadd.xlane.f32.xlu0 %v286
        %v288 = vpop.xlane.xlu0 %287
        %v289 = vmul.f32 %v284, %v284
        %v290 = vmul.f32 %v285, %v285
        %v291 = vadd.f32 %v289, %v290
        %292 = vadd.xlane.f32.xlu0 %v291
        %v293 = vpop.xlane.xlu0 %292
        %v294 = vmul.f32 %v288, 0.00390625
        %v295 = vmul.f32 %v293, 0.00390625
        %v296 = vmul.f32 %v294, %v294
        %v297 = vsub.f32 %v295, %v296
        %v298 = vmax.f32 %v297, 0.0
        %v299 = vadd.f32 %v298, 1e-05
        %v300 = vrsqrt.pop %v299
        %s301 = scalar_lea.vmem %s244, 16
        %v302 = vld [vmem:[%s301] sm:$0xff]
        %v303 = vmul.f32 %v300, %v302
        %s304 = scalar_lea.vmem %s244, 24
        %v305 = vld [vmem:[%s304] sm:$0xff]
        %v306 = vmul.f32 %v294, %v303
        %v307 = vsub.f32 %v305, %v306
        %309 = vset.pattern.permute.xlu0 0
        %310 = vperm.xlu0 %309, %v303
        %v311 = vpop.permute.xlu0 %310
        %v313 = vmul.f32 %v284, %v311
        %v314 = vmul.f32 %v285, %v311
        %316 = vset.pattern.permute.xlu0 0
        %317 = vperm.xlu0 %316, %v307
        %v318 = vpop.permute.xlu0 %317
        %v320 = vadd.f32 %v313, %v318
        %v321 = vadd.f32 %v314, %v318
        %322 = vst [vmem:[%s223] sm:$0xff] %v320
        %323 = vst [vmem:[%s223 + $0x8] sm:$0xff] %v321
        %s324 = sand.u32 %s121, 1
        %s325 = scalar_lea.sflag [#allocation3], %s324
        %s326 = sand.u32 %s121, 1
        %s327 = smul.addr %s326, 16
        %s328 = scalar_lea.vmem [#allocation2], %s327
        // Predicated region
        $region33: #{tpu_custom_call.1} parent=31 // pred_check
          %p329 = pneg %p131
        $region34: #{tpu_custom_call.1} parent=31 // pred_check_branch
          %331 = sbr.rel (%p329) target = $region36
        $region35: #{tpu_custom_call.1} parent=31 // pred_region
          %s333 = ssub.s32 256, 256
          %334 = vsyncadd %s325, %s333
          %s335 = smul.addr %s22, 2
          %s336 = smul.addr %s21, 2
          %s337 = sadd.s32 %s335, %s336
          %s338 = smul.addr %s337, 128
          %s339 = scalar_lea.hbm %s3, %s338
          %s341 = sshll.u32 %s328, 4
          %s342 = int_to_ptr.vmem [resolvable:$true] %s341
          %344 = dma.vmem_to_hbm [thread:$0]  %s342, 256, %s339, %s325
        $region36: #{tpu_custom_call.1} parent=31 // pred_fallthru
          _
      $region32: #{tpu_custom_call.1} parent=5 // pred_fallthru
        _
      %p345 = scmp.le.s32.totalorder 2, %s12
      // Predicated region
      $region37: #{tpu_custom_call.1} parent=5 // pred_check
        %p346 = pneg %p345
      $region38: #{tpu_custom_call.1} parent=5 // pred_check_branch
        %348 = sbr.rel (%p346) target = $region40
      $region39: #{tpu_custom_call.1} parent=5 // pred_region
        %s349 = ssub.s32 %s12, 2
        // Predicated region
        $region41: #{tpu_custom_call.1} parent=39 // pred_check
          %p350 = pneg %p137
        $region42: #{tpu_custom_call.1} parent=39 // pred_check_branch
          %352 = sbr.rel (%p350) target = $region44
        $region43: #{tpu_custom_call.1} parent=39 // pred_region
          %s353 = sand.u32 %s122, 1
          %s354 = scalar_lea.sflag [#allocation3], %s353
          %s355 = sand.u32 %s122, 1
          %s356 = smul.addr %s355, 16
          %s357 = scalar_lea.vmem [#allocation2], %s356
          %358 = dma.done %s354, 256
        $region44: #{tpu_custom_call.1} parent=39 // pred_fallthru
          _
      $region40: #{tpu_custom_call.1} parent=5 // pred_fallthru
        _
    $region6: #{tpu_custom_call.1} parent=1 // loop_footer
      %s16 = sadd.s32 1, %s12
    $region7: #{tpu_custom_call.1} parent=1 // loop_footer_branch
      %11 = sbr.rel target = $region3
    $region8: #{tpu_custom_call.1} parent=1 // loop_exit
      _
    %359 = vsyncpa [#allocation3], 1
    %s360 = scalar_lea.sflag [#allocation3], 1
    %361 = vsyncpa %s360, 1

</llo_original>
